<compile_context>
chip_gen: v7x
topology: tpu7x:2x2x1
jax: 0.10.0
libtpu: 0.0.40
codegen_flags: <defaults>
</compile_context>

<pallas_src>
import functools

import jax
import jax.numpy as jnp
from jax.experimental import pallas as pl
from jax.experimental.pallas import tpu as pltpu


_NEG_PAD = -1e9  # class-dim padding value


def _distill_kl_kernel(ys_ref, yt_ref, out_ref,
                       m_s_ref, s_s_ref, m_t_ref, s_t_ref, num_ref, *, inv_T):
    j = pl.program_id(1)

    @pl.when(j == 0)
    def _init():
        m_s_ref[...] = jnp.full_like(m_s_ref, -jnp.inf)
        m_t_ref[...] = jnp.full_like(m_t_ref, -jnp.inf)
        s_s_ref[...] = jnp.zeros_like(s_s_ref)
        s_t_ref[...] = jnp.zeros_like(s_t_ref)
        num_ref[...] = jnp.zeros_like(num_ref)

    a = ys_ref[...].astype(jnp.float32) * inv_T      # student logits / T
    b = yt_ref[...].astype(jnp.float32) * inv_T      # teacher logits / T

    # Student: online logsumexp pieces.
    m_s = jnp.maximum(m_s_ref[...], jnp.max(a, axis=-1, keepdims=True))
    alpha_s = jnp.exp(m_s_ref[...] - m_s)
    s_s_ref[...] = alpha_s * s_s_ref[...] + jnp.sum(
        jnp.exp(a - m_s), axis=-1, keepdims=True)
    m_s_ref[...] = m_s

    # Teacher: online denominator and numerator sum_c exp(b - m_t) * (b - a).
    # TODO(synk): on v6e/v7x the two exps could run in bf16 (native EUP bf16)
    # with f32 accumulation if a bundle dump shows EUP as the binding slot.
    m_t = jnp.maximum(m_t_ref[...], jnp.max(b, axis=-1, keepdims=True))
    alpha_t = jnp.exp(m_t_ref[...] - m_t)
    e_t = jnp.exp(b - m_t)
    s_t_ref[...] = alpha_t * s_t_ref[...] + jnp.sum(e_t, axis=-1, keepdims=True)
    num_ref[...] = alpha_t * num_ref[...] + jnp.sum(
        e_t * (b - a), axis=-1, keepdims=True)
    m_t_ref[...] = m_t

    @pl.when(j == pl.num_programs(1) - 1)
    def _finalize():
        lse_s = m_s_ref[...] + jnp.log(s_s_ref[...])
        lse_t = m_t_ref[...] + jnp.log(s_t_ref[...])
        per_row = (num_ref[...] * pl.reciprocal(s_t_ref[...], approx=False)
                   + (lse_s - lse_t))
        partial = jnp.sum(per_row)
        out_ref[...] = jnp.broadcast_to(partial, out_ref.shape).astype(out_ref.dtype)


def _round_up(x, m):
    return ((x + m - 1) // m) * m


def _vmem_limit_bytes():
    """Scoped-VMEM limit: ~100 MiB on 128 MiB parts, physical/2 on v7x."""
    mib = 1024 * 1024
    try:
        phys = int(pltpu.get_tpu_info().vmem_capacity_bytes)
    except Exception:
        return 32 * mib                       # unknown part: stay safe
    if phys >= 128 * mib:
        return 100 * mib                      # v5e / v6e
    return max(phys // 2, 16 * mib)           # v7x (64 MiB physical)


def _pick_tiles(n, c, in_dtype_bytes, vmem_limit, row_align):
    """Byte-based tile sizing.

    VMEM budget per block element: 2 inputs x 2 pipeline buffers in the input
    dtype plus ~6 f32 block-shaped temporaries in the body.  Target ~8 MiB per
    input block so per-grid-step overhead is negligible even at 3.2 TB/s.
    """
    per_elem = 2 * 2 * in_dtype_bytes + 6 * 4
    max_block_elems = max((6 * vmem_limit) // (10 * per_elem), 8 * 128)
    target_block_elems = (8 * 1024 * 1024) // in_dtype_bytes

    if row_align * c <= max_block_elems:
        # Full class dim per block; pick rows to hit the byte target.
        tile_c = c
        tile_n = min(target_block_elems, max_block_elems) // c
        tile_n = max(row_align, (tile_n // row_align) * row_align)
        tile_n = min(tile_n, _round_up(max(n, 1), row_align))
    else:
        # Vocab-scale C: tile the class dim (online accumulation in-kernel),
        # keeping tile_c large (contiguous DMA segments along the lane dim).
        tile_n = row_align
        tile_c = max(128, ((max_block_elems // tile_n) // 128) * 128)
    return tile_n, tile_c


def distill_kl_loss(y_s, y_t, T, *, tile_n=None, tile_c=None):
    """Pallas implementation of DistillKL.forward.  y_s, y_t: (N, C) logits.

    Inputs may be bf16 (recommended on bandwidth-bound parts such as v5e:
    halves HBM traffic); all math runs in f32 inside the kernel.
    """
    assert y_s.shape == y_t.shape and y_s.ndim == 2
    n, c = y_s.shape
    in_bytes = jnp.dtype(y_s.dtype).itemsize
    row_align = max(8, 32 // max(in_bytes, 1))    # f32: 8, bf16: 16, int8/fp8: 32

    vmem_limit = _vmem_limit_bytes()
    auto_tn, auto_tc = _pick_tiles(n, c, in_bytes, vmem_limit, row_align)

    if tile_n is None:
        tile_n = auto_tn
        # Megacore: prefer >= 2 batch tiles so both TensorCores get work.
        while pl.cdiv(n, tile_n) < 2 and tile_n >= 2 * row_align:
            tile_n = max(row_align, ((tile_n // 2) // row_align) * row_align)
    tile_n = max(row_align, (int(tile_n) // row_align) * row_align)

    if tile_c is None:
        tile_c = auto_tc
    tile_c = int(tile_c)
    if tile_c >= c:
        tile_c = c
    else:
        tile_c = max(128, (tile_c // 128) * 128)
        if tile_c >= c:
            tile_c = c

    # Class padding (only when the class dim is tiled): -1e9 logits contribute
    # exactly 0 to every sum (exp underflows to 0 and student==teacher there).
    c_pad = c
    if tile_c < c:
        c_pad = _round_up(c, tile_c)
        if c_pad != c:
            y_s = jnp.pad(y_s, ((0, 0), (0, c_pad - c)), constant_values=_NEG_PAD)
            y_t = jnp.pad(y_t, ((0, 0), (0, c_pad - c)), constant_values=_NEG_PAD)

    # Batch padding with zero rows: student == teacher -> KL term is exactly 0.
    n_pad = _round_up(n, tile_n)
    if n_pad != n:
        y_s = jnp.pad(y_s, ((0, n_pad - n), (0, 0)))
        y_t = jnp.pad(y_t, ((0, n_pad - n), (0, 0)))

    num_tiles_n = n_pad // tile_n
    num_tiles_c = c_pad // tile_c

    kernel = functools.partial(_distill_kl_kernel, inv_T=1.0 / float(T))
    partials = pl.pallas_call(
        kernel,
        out_shape=jax.ShapeDtypeStruct((num_tiles_n, 8, 128), jnp.float32),
        grid=(num_tiles_n, num_tiles_c),
        in_specs=[
            pl.BlockSpec((tile_n, tile_c), lambda i, j: (i, j)),
            pl.BlockSpec((tile_n, tile_c), lambda i, j: (i, j)),
        ],
        out_specs=pl.BlockSpec((1, 8, 128), lambda i, j: (i, 0, 0)),
        scratch_shapes=[pltpu.VMEM((tile_n, 1), jnp.float32)] * 5,
        compiler_params=pltpu.CompilerParams(
            dimension_semantics=("parallel", "arbitrary"),
            vmem_limit_bytes=vmem_limit,
        ),
    )(y_s, y_t)

    # Tiny final reduction + scaling, outside the hot path.
    total = jnp.sum(partials[:, 0, 0])
    return total * (float(T) ** 2 / float(n))


def _distill_kl_ref(y_s, y_t, T):
    log_p_s = jax.nn.log_softmax(y_s.astype(jnp.float32) / T, axis=1)
    p_t = jax.nn.softmax(y_t.astype(jnp.float32) / T, axis=1)
    log_p_t = jax.nn.log_softmax(y_t.astype(jnp.float32) / T, axis=1)
    kl = jnp.sum(p_t * (log_p_t - log_p_s))
    return kl * (T ** 2) / y_s.shape[0]


if __name__ == "__main__":
    key = jax.random.PRNGKey(0)
    k1, k2, k3, k4, k5, k6 = jax.random.split(key, 6)

    # Case 1: small module-sized problem (batch=8, classes=32), f32 inputs,
    # single class block, auto tile sizes.
    T = 4.0
    y_s = jax.random.normal(k1, (8, 32), dtype=jnp.float32)
    y_t = jax.random.normal(k2, (8, 32), dtype=jnp.float32)
    loss = jax.block_until_ready(distill_kl_loss(y_s, y_t, T))
    ref = _distill_kl_ref(y_s, y_t, T)
    assert jnp.allclose(loss, ref, rtol=1e-5, atol=1e-5), (loss, ref)

    # Case 2: batch not a multiple of the tile, forced multi-tile batch grid
    # (exercises zero-row padding + the "parallel" axis), bf16 inputs in HBM.
    T2 = 2.0
    y_s2 = jax.random.normal(k3, (100, 257), dtype=jnp.float32).astype(jnp.bfloat16)
    y_t2 = jax.random.normal(k4, (100, 257), dtype=jnp.float32).astype(jnp.bfloat16)
    loss2 = jax.block_until_ready(distill_kl_loss(y_s2, y_t2, T2, tile_n=16))
    ref2 = _distill_kl_ref(y_s2, y_t2, T2)
    assert jnp.allclose(loss2, ref2, rtol=1e-4, atol=1e-4), (loss2, ref2)

    # Case 3: forced class-dim tiling (two class blocks, -1e9 class padding,
    # online logsumexp accumulation path), f32 inputs.
    T3 = 3.0
    y_s3 = jax.random.normal(k5, (24, 200), dtype=jnp.float32)
    y_t3 = jax.random.normal(k6, (24, 200), dtype=jnp.float32)
    loss3 = jax.block_until_ready(
        distill_kl_loss(y_s3, y_t3, T3, tile_n=8, tile_c=128))
    ref3 = _distill_kl_ref(y_s3, y_t3, T3)
    assert jnp.allclose(loss3, ref3, rtol=2e-5, atol=1e-5), (loss3, ref3)

    print("KERNEL_OK")
</pallas_src>

<mosaic_0001>
module attributes {stable_mosaic.version = 11 : i64} {
  func.func @_distill_kl_kernel(%arg0: i32, %arg1: i32, %arg2: memref<8x32xf32, #tpu.memory_space<vmem>>, %arg3: memref<8x32xf32, #tpu.memory_space<vmem>>, %arg4: memref<1x8x128xf32, #tpu.memory_space<vmem>>, %arg5: memref<8x1xf32, #tpu.memory_space<vmem>>, %arg6: memref<8x1xf32, #tpu.memory_space<vmem>>, %arg7: memref<8x1xf32, #tpu.memory_space<vmem>>, %arg8: memref<8x1xf32, #tpu.memory_space<vmem>>, %arg9: memref<8x1xf32, #tpu.memory_space<vmem>>) attributes {dimension_semantics = [#tpu.dimension_semantics<parallel>, #tpu.dimension_semantics<arbitrary>], iteration_bounds = array<i64: 1, 1>, scalar_prefetch = 0 : i64, scratch_operands = 5 : i64, tpu.core_type = #tpu.core_type<tc>, window_params = [{transform_indices = @transform_0, window_bounds = array<i64: 8, 32>}, {transform_indices = @transform_1, window_bounds = array<i64: 8, 32>}, {transform_indices = @transform_2, window_bounds = array<i64: 1, 8, 128>}]} {
    %c0_i32 = arith.constant 0 : i32
    %0 = arith.cmpi eq, %arg1, %c0_i32 : i32
    %1 = arith.extui %0 : i1 to i32
    %c0_i32_0 = arith.constant 0 : i32
    %2 = arith.cmpi ne, %1, %c0_i32_0 : i32
    scf.if %2 {
      %cst_36 = arith.constant 0xFF800000 : f32
      %54 = vector.broadcast %cst_36 : f32 to vector<8x1xf32>
      %c0_37 = arith.constant 0 : index
      %c0_38 = arith.constant 0 : index
      %55 = vector.load %arg5[%c0_37, %c0_38] : memref<8x1xf32, #tpu.memory_space<vmem>>, vector<8x1xf32>
      tpu.vector_store %arg5[%c0_37, %c0_38], %54 {strides = array<i32>} : memref<8x1xf32, #tpu.memory_space<vmem>>, vector<8x1xf32>,
      %cst_39 = arith.constant 0xFF800000 : f32
      %56 = vector.broadcast %cst_39 : f32 to vector<8x1xf32>
      %c0_40 = arith.constant 0 : index
      %c0_41 = arith.constant 0 : index
      %57 = vector.load %arg7[%c0_40, %c0_41] : memref<8x1xf32, #tpu.memory_space<vmem>>, vector<8x1xf32>
      tpu.vector_store %arg7[%c0_40, %c0_41], %56 {strides = array<i32>} : memref<8x1xf32, #tpu.memory_space<vmem>>, vector<8x1xf32>,
      %cst_42 = arith.constant 0.000000e+00 : f32
      %58 = vector.broadcast %cst_42 : f32 to vector<8x1xf32>
      %c0_43 = arith.constant 0 : index
      %c0_44 = arith.constant 0 : index
      %59 = vector.load %arg6[%c0_43, %c0_44] : memref<8x1xf32, #tpu.memory_space<vmem>>, vector<8x1xf32>
      tpu.vector_store %arg6[%c0_43, %c0_44], %58 {strides = array<i32>} : memref<8x1xf32, #tpu.memory_space<vmem>>, vector<8x1xf32>,
      %cst_45 = arith.constant 0.000000e+00 : f32
      %60 = vector.broadcast %cst_45 : f32 to vector<8x1xf32>
      %c0_46 = arith.constant 0 : index
      %c0_47 = arith.constant 0 : index
      %61 = vector.load %arg8[%c0_46, %c0_47] : memref<8x1xf32, #tpu.memory_space<vmem>>, vector<8x1xf32>
      tpu.vector_store %arg8[%c0_46, %c0_47], %60 {strides = array<i32>} : memref<8x1xf32, #tpu.memory_space<vmem>>, vector<8x1xf32>,
      %cst_48 = arith.constant 0.000000e+00 : f32
      %62 = vector.broadcast %cst_48 : f32 to vector<8x1xf32>
      %c0_49 = arith.constant 0 : index
      %c0_50 = arith.constant 0 : index
      %63 = vector.load %arg9[%c0_49, %c0_50] : memref<8x1xf32, #tpu.memory_space<vmem>>, vector<8x1xf32>
      tpu.vector_store %arg9[%c0_49, %c0_50], %62 {strides = array<i32>} : memref<8x1xf32, #tpu.memory_space<vmem>>, vector<8x1xf32>,
    } else {
    }
    %c0 = arith.constant 0 : index
    %c0_1 = arith.constant 0 : index
    %3 = vector.load %arg2[%c0, %c0_1] : memref<8x32xf32, #tpu.memory_space<vmem>>, vector<8x32xf32>
    %cst = arith.constant 2.500000e-01 : f32
    %4 = vector.broadcast %cst : f32 to vector<8x32xf32>
    %5 = arith.mulf %3, %4 : vector<8x32xf32>
    %c0_2 = arith.constant 0 : index
    %c0_3 = arith.constant 0 : index
    %6 = vector.load %arg3[%c0_2, %c0_3] : memref<8x32xf32, #tpu.memory_space<vmem>>, vector<8x32xf32>
    %cst_4 = arith.constant 2.500000e-01 : f32
    %7 = vector.broadcast %cst_4 : f32 to vector<8x32xf32>
    %8 = arith.mulf %6, %7 : vector<8x32xf32>
    %c0_5 = arith.constant 0 : index
    %c0_6 = arith.constant 0 : index
    %9 = vector.load %arg5[%c0_5, %c0_6] : memref<8x1xf32, #tpu.memory_space<vmem>>, vector<8x1xf32>
    %cst_7 = arith.constant dense<0xFF800000> : vector<8xf32>
    %10 = vector.multi_reduction <maximumf>, %5, %cst_7 [1] : vector<8x32xf32> to vector<8xf32>
    %11 = vector.shape_cast %10 : vector<8xf32> to vector<8x1xf32>
    %12 = arith.maximumf %9, %11 : vector<8x1xf32>
    %c0_8 = arith.constant 0 : index
    %c0_9 = arith.constant 0 : index
    %13 = vector.load %arg5[%c0_8, %c0_9] : memref<8x1xf32, #tpu.memory_space<vmem>>, vector<8x1xf32>
    %14 = arith.subf %13, %12 : vector<8x1xf32>
    %15 = math.exp %14 : vector<8x1xf32>
    %c0_10 = arith.constant 0 : index
    %c0_11 = arith.constant 0 : index
    %16 = vector.load %arg6[%c0_10, %c0_11] : memref<8x1xf32, #tpu.memory_space<vmem>>, vector<8x1xf32>
    %17 = arith.mulf %15, %16 : vector<8x1xf32>
    %18 = vector.broadcast %12 : vector<8x1xf32> to vector<8x32xf32>
    %19 = arith.subf %5, %18 : vector<8x32xf32>
    %20 = math.exp %19 : vector<8x32xf32>
    %cst_12 = arith.constant dense<0.000000e+00> : vector<8xf32>
    %21 = vector.multi_reduction <add>, %20, %cst_12 [1] : vector<8x32xf32> to vector<8xf32>
    %22 = vector.shape_cast %21 : vector<8xf32> to vector<8x1xf32>
    %23 = arith.addf %17, %22 : vector<8x1xf32>
    %c0_13 = arith.constant 0 : index
    %c0_14 = arith.constant 0 : index
    %24 = vector.load %arg6[%c0_13, %c0_14] : memref<8x1xf32, #tpu.memory_space<vmem>>, vector<8x1xf32>
    tpu.vector_store %arg6[%c0_13, %c0_14], %23 {strides = array<i32>} : memref<8x1xf32, #tpu.memory_space<vmem>>, vector<8x1xf32>,
    %c0_15 = arith.constant 0 : index
    %c0_16 = arith.constant 0 : index
    %25 = vector.load %arg5[%c0_15, %c0_16] : memref<8x1xf32, #tpu.memory_space<vmem>>, vector<8x1xf32>
    tpu.vector_store %arg5[%c0_15, %c0_16], %12 {strides = array<i32>} : memref<8x1xf32, #tpu.memory_space<vmem>>, vector<8x1xf32>,
    %c0_17 = arith.constant 0 : index
    %c0_18 = arith.constant 0 : index
    %26 = vector.load %arg7[%c0_17, %c0_18] : memref<8x1xf32, #tpu.memory_space<vmem>>, vector<8x1xf32>
    %cst_19 = arith.constant dense<0xFF800000> : vector<8xf32>
    %27 = vector.multi_reduction <maximumf>, %8, %cst_19 [1] : vector<8x32xf32> to vector<8xf32>
    %28 = vector.shape_cast %27 : vector<8xf32> to vector<8x1xf32>
    %29 = arith.maximumf %26, %28 : vector<8x1xf32>
    %c0_20 = arith.constant 0 : index
    %c0_21 = arith.constant 0 : index
    %30 = vector.load %arg7[%c0_20, %c0_21] : memref<8x1xf32, #tpu.memory_space<vmem>>, vector<8x1xf32>
    %31 = arith.subf %30, %29 : vector<8x1xf32>
    %32 = math.exp %31 : vector<8x1xf32>
    %33 = vector.broadcast %29 : vector<8x1xf32> to vector<8x32xf32>
    %34 = arith.subf %8, %33 : vector<8x32xf32>
    %35 = math.exp %34 : vector<8x32xf32>
    %c0_22 = arith.constant 0 : index
    %c0_23 = arith.constant 0 : index
    %36 = vector.load %arg8[%c0_22, %c0_23] : memref<8x1xf32, #tpu.memory_space<vmem>>, vector<8x1xf32>
    %37 = arith.mulf %32, %36 : vector<8x1xf32>
    %cst_24 = arith.constant dense<0.000000e+00> : vector<8xf32>
    %38 = vector.multi_reduction <add>, %35, %cst_24 [1] : vector<8x32xf32> to vector<8xf32>
    %39 = vector.shape_cast %38 : vector<8xf32> to vector<8x1xf32>
    %40 = arith.addf %37, %39 : vector<8x1xf32>
    %c0_25 = arith.constant 0 : index
    %c0_26 = arith.constant 0 : index
    %41 = vector.load %arg8[%c0_25, %c0_26] : memref<8x1xf32, #tpu.memory_space<vmem>>, vector<8x1xf32>
    tpu.vector_store %arg8[%c0_25, %c0_26], %40 {strides = array<i32>} : memref<8x1xf32, #tpu.memory_space<vmem>>, vector<8x1xf32>,
    %c0_27 = arith.constant 0 : index
    %c0_28 = arith.constant 0 : index
    %42 = vector.load %arg9[%c0_27, %c0_28] : memref<8x1xf32, #tpu.memory_space<vmem>>, vector<8x1xf32>
    %43 = arith.mulf %32, %42 : vector<8x1xf32>
    %44 = arith.subf %8, %5 : vector<8x32xf32>
    %45 = arith.mulf %35, %44 : vector<8x32xf32>
    %cst_29 = arith.constant dense<0.000000e+00> : vector<8xf32>
    %46 = vector.multi_reduction <add>, %45, %cst_29 [1] : vector<8x32xf32> to vector<8xf32>
    %47 = vector.shape_cast %46 : vector<8xf32> to vector<8x1xf32>
    %48 = arith.addf %43, %47 : vector<8x1xf32>
    %c0_30 = arith.constant 0 : index
    %c0_31 = arith.constant 0 : index
    %49 = vector.load %arg9[%c0_30, %c0_31] : memref<8x1xf32, #tpu.memory_space<vmem>>, vector<8x1xf32>
    tpu.vector_store %arg9[%c0_30, %c0_31], %48 {strides = array<i32>} : memref<8x1xf32, #tpu.memory_space<vmem>>, vector<8x1xf32>,
    %c0_32 = arith.constant 0 : index
    %c0_33 = arith.constant 0 : index
    %50 = vector.load %arg7[%c0_32, %c0_33] : memref<8x1xf32, #tpu.memory_space<vmem>>, vector<8x1xf32>
    tpu.vector_store %arg7[%c0_32, %c0_33], %29 {strides = array<i32>} : memref<8x1xf32, #tpu.memory_space<vmem>>, vector<8x1xf32>,
    %c0_i32_34 = arith.constant 0 : i32
    %51 = arith.cmpi eq, %arg1, %c0_i32_34 : i32
    %52 = arith.extui %51 : i1 to i32
    %c0_i32_35 = arith.constant 0 : i32
    %53 = arith.cmpi ne, %52, %c0_i32_35 : i32
    scf.if %53 {
      %c0_36 = arith.constant 0 : index
      %c0_37 = arith.constant 0 : index
      %54 = vector.load %arg5[%c0_36, %c0_37] : memref<8x1xf32, #tpu.memory_space<vmem>>, vector<8x1xf32>
      %c0_38 = arith.constant 0 : index
      %c0_39 = arith.constant 0 : index
      %55 = vector.load %arg6[%c0_38, %c0_39] : memref<8x1xf32, #tpu.memory_space<vmem>>, vector<8x1xf32>
      %56 = math.log %55 : vector<8x1xf32>
      %57 = arith.addf %54, %56 : vector<8x1xf32>
      %c0_40 = arith.constant 0 : index
      %c0_41 = arith.constant 0 : index
      %58 = vector.load %arg7[%c0_40, %c0_41] : memref<8x1xf32, #tpu.memory_space<vmem>>, vector<8x1xf32>
      %c0_42 = arith.constant 0 : index
      %c0_43 = arith.constant 0 : index
      %59 = vector.load %arg8[%c0_42, %c0_43] : memref<8x1xf32, #tpu.memory_space<vmem>>, vector<8x1xf32>
      %60 = math.log %59 : vector<8x1xf32>
      %61 = arith.addf %58, %60 : vector<8x1xf32>
      %c0_44 = arith.constant 0 : index
      %c0_45 = arith.constant 0 : index
      %62 = vector.load %arg9[%c0_44, %c0_45] : memref<8x1xf32, #tpu.memory_space<vmem>>, vector<8x1xf32>
      %c0_46 = arith.constant 0 : index
      %c0_47 = arith.constant 0 : index
      %63 = vector.load %arg8[%c0_46, %c0_47] : memref<8x1xf32, #tpu.memory_space<vmem>>, vector<8x1xf32>
      %64 = tpu.reciprocal %63 : vector<8x1xf32> -> vector<8x1xf32>
      %65 = arith.mulf %62, %64 : vector<8x1xf32>
      %66 = arith.subf %57, %61 : vector<8x1xf32>
      %67 = arith.addf %65, %66 : vector<8x1xf32>
      %68 = vector.shape_cast %67 : vector<8x1xf32> to vector<1x8x1xf32>
      %cst_48 = arith.constant dense<0.000000e+00> : vector<1xf32>
      %69 = vector.multi_reduction <add>, %68, %cst_48 [1, 2] : vector<1x8x1xf32> to vector<1xf32>
      %70 = vector.shape_cast %69 : vector<1xf32> to vector<1x1x1xf32>
      %71 = vector.extract %70[0, 0, 0] : f32 from vector<1x1x1xf32>
      %72 = vector.broadcast %71 : f32 to vector<1x8x128xf32>
      %c0_49 = arith.constant 0 : index
      %c0_50 = arith.constant 0 : index
      %c0_51 = arith.constant 0 : index
      %73 = vector.load %arg4[%c0_49, %c0_50, %c0_51] : memref<1x8x128xf32, #tpu.memory_space<vmem>>, vector<1x8x128xf32>
      tpu.vector_store %arg4[%c0_49, %c0_50, %c0_51], %72 {strides = array<i32>} : memref<1x8x128xf32, #tpu.memory_space<vmem>>, vector<1x8x128xf32>,
    } else {
    }
    return
  }
  func.func @transform_0(%arg0: i32, %arg1: i32) -> (i32, i32) {
    %c0_i32 = arith.constant 0 : i32
    return %arg0, %arg1 : i32, i32
  }
  func.func @transform_1(%arg0: i32, %arg1: i32) -> (i32, i32) {
    %c0_i32 = arith.constant 0 : i32
    return %arg0, %arg1 : i32, i32
  }
  func.func @transform_2(%arg0: i32, %arg1: i32) -> (i32, i32, i32) {
    %c0_i32 = arith.constant 0 : i32
    %c0_i32_0 = arith.constant 0 : i32
    %c0_i32_1 = arith.constant 0 : i32
    return %arg0, %c0_i32, %c0_i32_0 : i32, i32, i32
  }
}

</mosaic_0001>

<llo_original>
// kernel: tpu_custom_call.1
$region0: #{tpu_custom_call.1}
  #allocation0 [shape = 'u32[]', space=smem, size = 0x4, offset = 0x4, fixed_abs, tag = 'smem constant byte address 0x4 - core index']
  #allocation1 [shape = 'u32[144,128]{1,0:T(1,128)}', space=vmem, size = 0x12000, scoped, tag = 'internal scratch']
  #allocation2 [shape = 'f32[8,1]{1,0:T(8,128)}', space=vmem, size = 0x1000, scoped, tag = 'scratch operand']
  #allocation3 [shape = 'f32[8,1]{1,0:T(8,128)}', space=vmem, size = 0x1000, scoped, tag = 'scratch operand']
  #allocation4 [shape = 'f32[8,1]{1,0:T(8,128)}', space=vmem, size = 0x1000, scoped, tag = 'scratch operand']
  #allocation5 [shape = 'f32[8,1]{1,0:T(8,128)}', space=vmem, size = 0x1000, scoped, tag = 'scratch operand']
  #allocation6 [shape = 'f32[8,1]{1,0:T(8,128)}', space=vmem, size = 0x1000, scoped, tag = 'scratch operand']
  %s0 = inlined_call_operand.hbm [shape: f32[8,32], index: 0, kind: input, shape index: {}]
  %s1 = inlined_call_operand.hbm [shape: f32[8,32], index: 1, kind: input, shape index: {}]
  %s2 = inlined_call_operand.hbm [shape: f32[1,8,128], index: 2, kind: output, shape index: {}]
  %s3 = sld [smem:[#allocation0]]
  $region34: #{tpu_custom_call.1} parent=0
    _
  %s5 = ssub.s32 1, %s3
  %s6 = scalar_select 0, %s5, %s3
  $region1: #{tpu_custom_call.1} parent=0
    #allocation7 [shape = 'u8[4096]{0}', space=vmem, size = 0x1000, scoped, tag = 'input window, operand 0, single buffered']
    #allocation8 [shape = 's32[1]{0}', space=sflag, size = 0x4, scoped, tag = 'scoped memory for tpu_custom_call.1']
    #allocation9 [shape = 's32[1]{0}', space=sflag, size = 0x4, scoped, tag = 'scoped memory for tpu_custom_call.1']
    #allocation10 [shape = 'u8[4096]{0}', space=vmem, size = 0x1000, scoped, tag = 'input window, operand 1, single buffered']
    #allocation11 [shape = 's32[1]{0}', space=sflag, size = 0x4, scoped, tag = 'scoped memory for tpu_custom_call.1']
    #allocation12 [shape = 'u8[4096]{0}', space=vmem, size = 0x1000, scoped, tag = 'output window, operand 0, single buffered']
    %7 = vsyncpa [#allocation8], 0
    %8 = vsyncpa [#allocation11], 0
    %9 = vsyncpa [#allocation9], 0
    // Predicated region
    $region2: #{tpu_custom_call.1} parent=1 // pred_check
      _
    $region3: #{tpu_custom_call.1} parent=1 // pred_check_branch
      %11 = sbr.rel (0) target = $region5
    $region4: #{tpu_custom_call.1} parent=1 // pred_region
      %s13 = ssub.s32 128, 128
      %14 = vsyncadd [#allocation8], %s13
      %s16 = sshll.u32 [#allocation7], 4
      %s17 = int_to_ptr.vmem [resolvable:$true] %s16
      %19 = dma.hbm_to_vmem [thread:$0]  %s0, 128, %s17, [#allocation8]
    $region5: #{tpu_custom_call.1} parent=1 // pred_fallthru
      _
    // Predicated region
    $region6: #{tpu_custom_call.1} parent=1 // pred_check
      _
    $region7: #{tpu_custom_call.1} parent=1 // pred_check_branch
      %21 = sbr.rel (0) target = $region9
    $region8: #{tpu_custom_call.1} parent=1 // pred_region
      %s23 = ssub.s32 128, 128
      %24 = vsyncadd [#allocation11], %s23
      %s26 = sshll.u32 [#allocation10], 4
      %s27 = int_to_ptr.vmem [resolvable:$true] %s26
      %29 = dma.hbm_to_vmem [thread:$0]  %s1, 128, %s27, [#allocation11]
    $region9: #{tpu_custom_call.1} parent=1 // pred_fallthru
      _
    // Predicated region
    $region10: #{tpu_custom_call.1} parent=1 // pred_check
      _
    $region11: #{tpu_custom_call.1} parent=1 // pred_check_branch
      %31 = sbr.rel (0) target = $region13
    $region12: #{tpu_custom_call.1} parent=1 // pred_region
      %32 = dma.done [#allocation8], 128
    $region13: #{tpu_custom_call.1} parent=1 // pred_fallthru
      _
    // Predicated region
    $region14: #{tpu_custom_call.1} parent=1 // pred_check
      _
    $region15: #{tpu_custom_call.1} parent=1 // pred_check_branch
      %34 = sbr.rel (0) target = $region17
    $region16: #{tpu_custom_call.1} parent=1 // pred_region
      %35 = dma.done [#allocation11], 128
    $region17: #{tpu_custom_call.1} parent=1 // pred_fallthru
      _
    %p36 = scmp.eq.s32.totalorder 0, 0
    // Predicated region
    $region18: #{tpu_custom_call.1} parent=1 // pred_check
      %p37 = pneg %p36
    $region19: #{tpu_custom_call.1} parent=1 // pred_check_branch
      %39 = sbr.rel (%p37) target = $region21
    $region20: #{tpu_custom_call.1} parent=1 // pred_region
      %vm40 = vcmask 7168
      %41 = vst.msk [vmem:[#allocation2] sm:$0xff] %vm40, -inf
      %42 = vst.msk [vmem:[#allocation4] sm:$0xff] %vm40, -inf
      %43 = vst.msk [vmem:[#allocation3] sm:$0xff] %vm40, 0.0
      %44 = vst.msk [vmem:[#allocation5] sm:$0xff] %vm40, 0.0
      %45 = vst.msk [vmem:[#allocation6] sm:$0xff] %vm40, 0.0
    $region21: #{tpu_custom_call.1} parent=1 // pred_fallthru
      _
    %v46 = vld [vmem:[#allocation7] sm:$0xff]
    %v47 = vmul.f32 %v46, 0.25
    %v48 = vld [vmem:[#allocation10] sm:$0xff]
    %v49 = vmul.f32 %v48, 0.25
    %v50 = vld [vmem:[#allocation2] sm:$0xff]
    %vm51 = vcmask 261120
    %v52 = vsel %vm51, %v47, -inf
    %53 = vmax.xlane.f32.xlu0 %v52
    %v54 = vpop.xlane.xlu0 %53
    %v55 = vmax.f32 %v50, %v54
    %v56 = vsub.f32 %v50, %v55
    %v57 = vmul.f32 %v56, 1.442695
    %v58 = vpow.pop %v57
    %v59 = vld [vmem:[#allocation3] sm:$0xff]
    %v60 = vmul.f32 %v58, %v59
    %62 = vset.pattern.permute.xlu0 0
    %63 = vperm.xlu0 %62, %v55
    %v64 = vpop.permute.xlu0 %63
    %v66 = vsub.f32 %v47, %v64
    %v67 = vmul.f32 %v66, 1.442695
    %v68 = vpow.pop %v67
    %v69 = vsel %vm51, %v68, 0.0
    %70 = vadd.xlane.f32.xlu0 %v69
    %v71 = vpop.xlane.xlu0 %70
    %v72 = vadd.f32 %v60, %v71
    %vm73 = vcmask 7168
    %74 = vst.msk [vmem:[#allocation3] sm:$0xff] %vm73, %v72
    %75 = vst.msk [vmem:[#allocation2] sm:$0xff] %vm73, %v55
    %v76 = vld [vmem:[#allocation4] sm:$0xff]
    %v77 = vsel %vm51, %v49, -inf
    %78 = vmax.xlane.f32.xlu0 %v77
    %v79 = vpop.xlane.xlu0 %78
    %v80 = vmax.f32 %v76, %v79
    %v81 = vsub.f32 %v76, %v80
    %v82 = vmul.f32 %v81, 1.442695
    %v83 = vpow.pop %v82
    %85 = vset.pattern.permute.xlu0 0
    %86 = vperm.xlu0 %85, %v80
    %v87 = vpop.permute.xlu0 %86
    %v89 = vsub.f32 %v49, %v87
    %v90 = vmul.f32 %v89, 1.442695
    %v91 = vpow.pop %v90
    %v92 = vld [vmem:[#allocation5] sm:$0xff]
    %v93 = vmul.f32 %v83, %v92
    %v94 = vsel %vm51, %v91, 0.0
    %95 = vadd.xlane.f32.xlu0 %v94
    %v96 = vpop.xlane.xlu0 %95
    %v97 = vadd.f32 %v93, %v96
    %98 = vst.msk [vmem:[#allocation5] sm:$0xff] %vm73, %v97
    %v99 = vld [vmem:[#allocation6] sm:$0xff]
    %v100 = vmul.f32 %v83, %v99
    %v101 = vsub.f32 %v49, %v47
    %v102 = vmul.f32 %v91, %v101
    %v103 = vsel %vm51, %v102, 0.0
    %104 = vadd.xlane.f32.xlu0 %v103
    %v105 = vpop.xlane.xlu0 %104
    %v106 = vadd.f32 %v100, %v105
    %107 = vst.msk [vmem:[#allocation6] sm:$0xff] %vm73, %v106
    %108 = vst.msk [vmem:[#allocation4] sm:$0xff] %vm73, %v80
    // Predicated region
    $region22: #{tpu_custom_call.1} parent=1 // pred_check
      %p109 = pneg %p36
    $region23: #{tpu_custom_call.1} parent=1 // pred_check_branch
      %111 = sbr.rel (%p109) target = $region25
    $region24: #{tpu_custom_call.1} parent=1 // pred_region
      %v112 = vld [vmem:[#allocation2] sm:$0xff]
      %v113 = vld [vmem:[#allocation3] sm:$0xff]
      %v114 = vlog2.pop %v113
      %v115 = vmul.f32 %v114, 0.6931472
      %v116 = vadd.f32 %v112, %v115
      %v117 = vld [vmem:[#allocation4] sm:$0xff]
      %v118 = vld [vmem:[#allocation5] sm:$0xff]
      %v119 = vlog2.pop %v118
      %v120 = vmul.f32 %v119, 0.6931472
      %v121 = vadd.f32 %v117, %v120
      %v122 = vld [vmem:[#allocation6] sm:$0xff]
      %v123 = vrcp.pop %v118
      %v124 = vmul.f32 %v122, %v123
      %v125 = vsub.f32 %v116, %v121
      %v126 = vadd.f32 %v124, %v125
      %v127 = vsel %vm73, %v126, 0.0
      %128 = vadd.xlane.f32.xlu0 %v127
      %v129 = vpop.xlane.xlu0 %128
      %v130 = vrot.slane %v129, 4
      %v131 = vadd.f32 %v129, %v130
      %v132 = vrot.slane %v131, 2
      %v133 = vadd.f32 %v131, %v132
      %v134 = vrot.slane %v133, 1
      %v135 = vadd.f32 %v133, %v134
      %s136 = vtos %v135
      %v137 = vstv %s136
      %138 = vst [vmem:[#allocation12] sm:$0xff] %v137
    $region25: #{tpu_custom_call.1} parent=1 // pred_fallthru
      _
    // Predicated region
    $region26: #{tpu_custom_call.1} parent=1 // pred_check
      _
    $region27: #{tpu_custom_call.1} parent=1 // pred_check_branch
      %140 = sbr.rel (0) target = $region29
    $region28: #{tpu_custom_call.1} parent=1 // pred_region
      %s142 = ssub.s32 128, 128
      %143 = vsyncadd [#allocation9], %s142
      %s145 = sshll.u32 [#allocation12], 4
      %s146 = int_to_ptr.vmem [resolvable:$true] %s145
      %148 = dma.vmem_to_hbm [thread:$0]  %s146, 128, %s2, [#allocation9]
    $region29: #{tpu_custom_call.1} parent=1 // pred_fallthru
      _
    // Predicated region
    $region30: #{tpu_custom_call.1} parent=1 // pred_check
      _
    $region31: #{tpu_custom_call.1} parent=1 // pred_check_branch
      %150 = sbr.rel (0) target = $region33
    $region32: #{tpu_custom_call.1} parent=1 // pred_region
      %151 = dma.done [#allocation9], 128
    $region33: #{tpu_custom_call.1} parent=1 // pred_fallthru
      _
    %152 = vsyncpa [#allocation8], 1
    %153 = vsyncpa [#allocation11], 1
    %154 = vsyncpa [#allocation9], 1

</llo_original>
